<compile_context>
chip_gen: v7x
topology: tpu7x:2x2x1
jax: 0.10.0
libtpu: 0.0.40
codegen_flags: <defaults>
</compile_context>

<pallas_src>
import numpy as np
import jax
import jax.numpy as jnp
from jax.experimental import pallas as pl
from jax.experimental.pallas import tpu as pltpu


MATMUL_DTYPE = jnp.bfloat16       # MXU operand dtype (accumulation is always f32)
ACT_DTYPE = jnp.bfloat16          # HBM dtype of token-embed intermediate activations
_LN_EPS = 1e-5
_BN_EPS = 1e-5
_MASK_NEG = -1e30                 # overflow-safe large-negative softmax mask value
_VMEM_LIMIT = 32 * 1024 * 1024    # scoped VMEM budget (safe on v7x's 64 MiB physical)


def _cparams(n_parallel_axes=1):
    return pltpu.CompilerParams(
        dimension_semantics=("parallel",) * n_parallel_axes,
        vmem_limit_bytes=_VMEM_LIMIT)


def _round8(x):
    return ((x + 7) // 8) * 8


def _row_tile(m, target=128):
    """Sublane-aligned row tile; gives >= 2 grid steps whenever m > 8 (v7x dual-TC)."""
    return max(8, min(target, _round8((m + 1) // 2)))


def _group_tile(bg):
    """Groups per grid step: divides bg exactly (keeps fused BN stats exact) and gives
    >= 2 grid steps whenever possible (v7x dual-TC)."""
    for tg in (8, 4, 2, 1):
        if bg % tg == 0 and bg // tg >= 2:
            return tg
    return bg


def _pad_rows(arr, mp):
    m = arr.shape[0]
    if m == mp:
        return arr
    return jnp.pad(arr, ((0, mp - m),) + ((0, 0),) * (arr.ndim - 1))


def _erf(x):
    # TODO(synk): exact nn.GELU uses erf; lax.erf has no guaranteed Mosaic lowering, so
    # use the Abramowitz & Stegun 7.1.26 polynomial (max abs err ~1.5e-7, f32-accurate).
    ax = jnp.where(x >= 0.0, x, -x)
    t = 1.0 / (1.0 + 0.3275911 * ax)
    poly = ((((1.061405429 * t - 1.453152027) * t + 1.421413741) * t
             - 0.284496736) * t + 0.254829592) * t
    y = 1.0 - poly * jnp.exp(-ax * ax)
    return jnp.where(x >= 0.0, y, -y)


def _gelu(x):
    return 0.5 * x * (1.0 + _erf(x * 0.7071067811865476))


def _ln(x, g, b):
    mu = jnp.mean(x, axis=-1, keepdims=True)
    xc = x - mu
    var = jnp.mean(xc * xc, axis=-1, keepdims=True)
    return xc * jax.lax.rsqrt(var + _LN_EPS) * g + b


# ------------------------------------------------------------------ token-embed kernels

def conv_rows_with_stats(x2d, w, b):
    """h = x @ w + b over row tiles.  Per-channel sum / sum-of-squares (needed by the
    following BatchNorm) are emitted by the same kernel as tiny per-tile outputs, so the
    activation is never re-read from HBM for the statistics."""
    M, K = x2d.shape
    N = w.shape[1]
    tm = _row_tile(M)
    mp = pl.cdiv(M, tm) * tm
    grid = mp // tm
    xp = _pad_rows(x2d.astype(jnp.float32), mp)
    wq = w.astype(MATMUL_DTYPE)
    br = b.reshape(1, N).astype(jnp.float32)

    def kernel(x_ref, w_ref, b_ref, o_ref, st_ref):
        z = jnp.dot(x_ref[...].astype(MATMUL_DTYPE), w_ref[...],
                    preferred_element_type=jnp.float32) + b_ref[...]
        o_ref[...] = z.astype(o_ref.dtype)
        st_ref[0] = jnp.concatenate(
            [jnp.sum(z, axis=0, keepdims=True),
             jnp.sum(z * z, axis=0, keepdims=True)], axis=0)

    h, st = pl.pallas_call(
        kernel,
        out_shape=(jax.ShapeDtypeStruct((mp, N), ACT_DTYPE),
                   jax.ShapeDtypeStruct((grid, 2, N), jnp.float32)),
        grid=(grid,),
        in_specs=[
            pl.BlockSpec((tm, K), lambda i: (i, 0)),
            pl.BlockSpec((K, N), lambda i: (0, 0)),
            pl.BlockSpec((1, N), lambda i: (0, 0)),
        ],
        out_specs=(pl.BlockSpec((tm, N), lambda i: (i, 0)),
                   pl.BlockSpec((1, 2, N), lambda i: (i, 0, 0))),
        compiler_params=_cparams(1),
    )(xp, wq, br)

    # Padded rows produce exactly the bias; subtract their contribution from the stats.
    pad = float(mp - M)
    bias = b.astype(jnp.float32)
    sums = jnp.sum(st[:, 0, :], axis=0) - pad * bias
    sqs = jnp.sum(st[:, 1, :], axis=0) - pad * bias * bias
    return h[:M], sums, sqs


def _bn_scale_shift(sums, sqs, count, gamma, beta):
    """Fold training-mode BatchNorm1d batch statistics into per-channel scale / shift."""
    # TODO(synk): mirrors PyTorch training-mode BN (batch stats); eval running stats
    # are not modeled.
    mean = sums / count
    var = jnp.maximum(sqs / count - mean * mean, 0.0)
    scale = gamma.astype(jnp.float32) * jax.lax.rsqrt(var + _BN_EPS)
    shift = beta.astype(jnp.float32) - mean * scale
    return scale.reshape(1, -1), shift.reshape(1, -1)


def te_first_to_conv3(h1, scale, shift, w2, b2, w3, b3):
    """Fused: BN1-scale/shift -> ReLU -> conv2 -> per-group max-pool -> concat -> conv3.
    One batched (tg*n)-row matmul per grid step (no per-group unroll).  Also emits the
    per-channel sum / sum-of-squares of the conv3 output needed by BN2."""
    BG, n, C1 = h1.shape
    C2 = w3.shape[1]
    tg = _group_tile(BG)
    grid = BG // tg
    w2q = w2.astype(MATMUL_DTYPE)
    w3g = w3[:C1].astype(MATMUL_DTYPE)      # rows applied to the broadcast global feature
    w3l = w3[C1:].astype(MATMUL_DTYPE)      # rows applied to the per-point local feature
    b2r = b2.reshape(1, C1).astype(jnp.float32)
    b3r = b3.reshape(1, C2).astype(jnp.float32)

    def kernel(h_ref, s_ref, t_ref, w2_ref, b2_ref, w3l_ref, w3g_ref, b3_ref,
               o_ref, st_ref):
        h = h_ref[...].astype(jnp.float32).reshape(tg * n, C1)
        y = jnp.maximum(h * s_ref[...] + t_ref[...], 0.0)                 # BN1 + ReLU
        z = jnp.dot(y.astype(MATMUL_DTYPE), w2_ref[...],
                    preferred_element_type=jnp.float32) + b2_ref[...]     # conv2
        g = jnp.max(z.reshape(tg, n, C1), axis=1)                         # group max-pool
        loc = jnp.dot(z.astype(MATMUL_DTYPE), w3l_ref[...],
                      preferred_element_type=jnp.float32) + b3_ref[...]   # conv3 (local)
        glo = jnp.dot(g.astype(MATMUL_DTYPE), w3g_ref[...],
                      preferred_element_type=jnp.float32)                 # conv3 (global)
        h3 = loc.reshape(tg, n, C2) + glo[:, None, :]
        o_ref[...] = h3.astype(o_ref.dtype)
        flat = h3.reshape(tg * n, C2)                                     # BN2 statistics
        st_ref[0] = jnp.concatenate(
            [jnp.sum(flat, axis=0, keepdims=True),
             jnp.sum(flat * flat, axis=0, keepdims=True)], axis=0)

    h3, st = pl.pallas_call(
        kernel,
        out_shape=(jax.ShapeDtypeStruct((BG, n, C2), ACT_DTYPE),
                   jax.ShapeDtypeStruct((grid, 2, C2), jnp.float32)),
        grid=(grid,),
        in_specs=[
            pl.BlockSpec((tg, n, C1), lambda i: (i, 0, 0)),
            pl.BlockSpec((1, C1), lambda i: (0, 0)),
            pl.BlockSpec((1, C1), lambda i: (0, 0)),
            pl.BlockSpec((C1, C1), lambda i: (0, 0)),
            pl.BlockSpec((1, C1), lambda i: (0, 0)),
            pl.BlockSpec((C1, C2), lambda i: (0, 0)),
            pl.BlockSpec((C1, C2), lambda i: (0, 0)),
            pl.BlockSpec((1, C2), lambda i: (0, 0)),
        ],
        out_specs=(pl.BlockSpec((tg, n, C2), lambda i: (i, 0, 0)),
                   pl.BlockSpec((1, 2, C2), lambda i: (i, 0, 0))),
        compiler_params=_cparams(1),
    )(h1, scale, shift, w2q, b2r, w3l, w3g, b3r)
    return h3, jnp.sum(st[:, 0, :], axis=0), jnp.sum(st[:, 1, :], axis=0)


def te_bn_conv_maxpool(h3, scale, shift, w4, b4):
    """Fused: BN2-scale/shift -> ReLU -> conv4 -> per-group max-pool.
    (BG, n, C) -> (BG, C_out), batched matmul per grid step."""
    BG, n, C = h3.shape
    C_out = w4.shape[1]
    tg = _group_tile(BG)
    grid = BG // tg
    wq = w4.astype(MATMUL_DTYPE)
    br = b4.reshape(1, C_out).astype(jnp.float32)

    def kernel(h_ref, s_ref, t_ref, w_ref, b_ref, o_ref):
        h = h_ref[...].astype(jnp.float32).reshape(tg * n, C)
        y = jnp.maximum(h * s_ref[...] + t_ref[...], 0.0)
        z = jnp.dot(y.astype(MATMUL_DTYPE), w_ref[...],
                    preferred_element_type=jnp.float32) + b_ref[...]
        o_ref[...] = jnp.max(z.reshape(tg, n, C_out), axis=1, keepdims=True)

    out = pl.pallas_call(
        kernel,
        out_shape=jax.ShapeDtypeStruct((BG, 1, C_out), jnp.float32),
        grid=(grid,),
        in_specs=[
            pl.BlockSpec((tg, n, C), lambda i: (i, 0, 0)),
            pl.BlockSpec((1, C), lambda i: (0, 0)),
            pl.BlockSpec((1, C), lambda i: (0, 0)),
            pl.BlockSpec((C, C_out), lambda i: (0, 0)),
            pl.BlockSpec((1, C_out), lambda i: (0, 0)),
        ],
        out_specs=pl.BlockSpec((tg, 1, C_out), lambda i: (i, 0, 0)),
        compiler_params=_cparams(1),
    )(h3, scale, shift, wq, br)
    return out.reshape(BG, C_out)


def token_embed_forward(p, pts):
    """Mini-PointNet token embedding.  pts: (B, G, n, in_c) -> (B, G, out_c)."""
    B, G, n, in_c = pts.shape
    out_c = p["conv4_w"].shape[1]
    half = out_c // 2
    BG = B * G
    rows = BG * n

    h1, s1, q1 = conv_rows_with_stats(pts.reshape(rows, in_c),
                                      p["conv1_w"], p["conv1_b"])        # conv1 (+BN1 stats)
    sc1, sh1 = _bn_scale_shift(s1, q1, rows, p["bn1_w"], p["bn1_b"])
    h3, s2, q2 = te_first_to_conv3(h1.reshape(BG, n, half), sc1, sh1,
                                   p["conv2_w"], p["conv2_b"],
                                   p["conv3_w"], p["conv3_b"])           # (+BN2 stats)
    sc2, sh2 = _bn_scale_shift(s2, q2, rows, p["bn2_w"], p["bn2_b"])
    g = te_bn_conv_maxpool(h3, sc2, sh2, p["conv4_w"], p["conv4_b"])     # conv4 + pool
    return g.reshape(B, G, out_c)


# --------------------------------------------------------------------- pos-embed kernel

def pos_embed_forward(p, centers2d):
    """Fused Linear -> GELU -> Linear positional embedding.  centers2d: (M, 3)."""
    M = centers2d.shape[0]
    C = p["w2"].shape[1]
    w1 = p["w1"].astype(MATMUL_DTYPE)
    b1 = p["b1"].reshape(1, C).astype(jnp.float32)
    w2 = p["w2"].astype(MATMUL_DTYPE)
    b2 = p["b2"].reshape(1, C).astype(jnp.float32)
    tm = _row_tile(M)
    mp = pl.cdiv(M, tm) * tm
    xp = _pad_rows(centers2d.astype(jnp.float32), mp)

    def kernel(x_ref, w1_ref, b1_ref, w2_ref, b2_ref, o_ref):
        h = jnp.dot(x_ref[...].astype(MATMUL_DTYPE), w1_ref[...],
                    preferred_element_type=jnp.float32) + b1_ref[...]
        h = _gelu(h)
        o_ref[...] = jnp.dot(h.astype(MATMUL_DTYPE), w2_ref[...],
                             preferred_element_type=jnp.float32) + b2_ref[...]

    out = pl.pallas_call(
        kernel,
        out_shape=jax.ShapeDtypeStruct((mp, C), jnp.float32),
        grid=(mp // tm,),
        in_specs=[
            pl.BlockSpec((tm, 3), lambda i: (i, 0)),
            pl.BlockSpec((3, C), lambda i: (0, 0)),
            pl.BlockSpec((1, C), lambda i: (0, 0)),
            pl.BlockSpec((C, C), lambda i: (0, 0)),
            pl.BlockSpec((1, C), lambda i: (0, 0)),
        ],
        out_specs=pl.BlockSpec((tm, C), lambda i: (i, 0)),
        compiler_params=_cparams(1),
    )(xp, w1, b1, w2, b2)
    return out[:M]


# ------------------------------------------------------------- fused transformer block

def encoder_block_forward(p, x, pos, mask, num_heads):
    """Whole pre-norm transformer block in ONE pallas_call gridded over batch:
    (+pos) -> LN1 -> per-head qkv -> attention (mask applied in-kernel) -> proj
    -> +residual -> LN2 -> fc1 -> GELU -> fc2 -> +residual.
    Heads use contiguous per-head weight stacks (leading-axis index) and are merged by
    accumulating through per-head proj weights (no lane slicing / concatenation)."""
    B, Np, C = x.shape
    H = num_heads
    D = C // H
    Hd = p["fc1_w"].shape[1]
    scale = D ** -0.5

    qkv_w = p["qkv_w"]
    qw = jnp.transpose(qkv_w[:, 0:C].reshape(C, H, D), (1, 0, 2)).astype(MATMUL_DTYPE)
    kw = jnp.transpose(qkv_w[:, C:2 * C].reshape(C, H, D), (1, 0, 2)).astype(MATMUL_DTYPE)
    vw = jnp.transpose(qkv_w[:, 2 * C:].reshape(C, H, D), (1, 0, 2)).astype(MATMUL_DTYPE)
    pw = p["proj_w"].reshape(H, D, C).astype(MATMUL_DTYPE)

    ln1w = p["ln1_w"].reshape(1, C).astype(jnp.float32)
    ln1b = p["ln1_b"].reshape(1, C).astype(jnp.float32)
    pb = p["proj_b"].reshape(1, C).astype(jnp.float32)
    ln2w = p["ln2_w"].reshape(1, C).astype(jnp.float32)
    ln2b = p["ln2_b"].reshape(1, C).astype(jnp.float32)
    w1 = p["fc1_w"].astype(MATMUL_DTYPE)
    b1 = p["fc1_b"].reshape(1, Hd).astype(jnp.float32)
    w2 = p["fc2_w"].astype(MATMUL_DTYPE)
    b2 = p["fc2_b"].reshape(1, C).astype(jnp.float32)

    def kernel(x_ref, p_ref, m_ref, ln1w_ref, ln1b_ref, qw_ref, kw_ref, vw_ref,
               pw_ref, pb_ref, ln2w_ref, ln2b_ref, w1_ref, b1_ref, w2_ref, b2_ref,
               o_ref):
        xin = x_ref[0] + p_ref[0]                                  # (Np, C), pos re-added
        hn = _ln(xin, ln1w_ref[...], ln1b_ref[...])
        hb = hn.astype(MATMUL_DTYPE)
        msk = m_ref[0] > 0.0                                       # (Np, Np)

        attn_proj = jnp.zeros((Np, C), jnp.float32)
        for hh in range(H):                                        # contiguous per-head tiles
            q = jnp.dot(hb, qw_ref[hh], preferred_element_type=jnp.float32)
            k = jnp.dot(hb, kw_ref[hh], preferred_element_type=jnp.float32)
            v = jnp.dot(hb, vw_ref[hh], preferred_element_type=jnp.float32)
            s = jax.lax.dot_general(q.astype(MATMUL_DTYPE), k.astype(MATMUL_DTYPE),
                                    (((1,), (1,)), ((), ())),
                                    preferred_element_type=jnp.float32) * scale
            s = jnp.where(msk, _MASK_NEG, s)                       # overflow-safe mask
            s = s - jnp.max(s, axis=-1, keepdims=True)
            e = jnp.exp(s)
            pr = e * pl.reciprocal(jnp.sum(e, axis=-1, keepdims=True), approx=True)
            head = jnp.dot(pr.astype(MATMUL_DTYPE), v.astype(MATMUL_DTYPE),
                           preferred_element_type=jnp.float32)     # (Np, D)
            attn_proj = attn_proj + jnp.dot(head.astype(MATMUL_DTYPE), pw_ref[hh],
                                            preferred_element_type=jnp.float32)

        x_res = xin + attn_proj + pb_ref[...]                      # attention residual
        h2 = _ln(x_res, ln2w_ref[...], ln2b_ref[...])
        a1 = _gelu(jnp.dot(h2.astype(MATMUL_DTYPE), w1_ref[...],
                           preferred_element_type=jnp.float32) + b1_ref[...])
        y = jnp.dot(a1.astype(MATMUL_DTYPE), w2_ref[...],
                    preferred_element_type=jnp.float32) + b2_ref[...]
        o_ref[0] = x_res + y                                       # MLP residual

    return pl.pallas_call(
        kernel,
        out_shape=jax.ShapeDtypeStruct((B, Np, C), jnp.float32),
        grid=(B,),
        in_specs=[
            pl.BlockSpec((1, Np, C), lambda b: (b, 0, 0)),
            pl.BlockSpec((1, Np, C), lambda b: (b, 0, 0)),
            pl.BlockSpec((1, Np, Np), lambda b: (b, 0, 0)),
            pl.BlockSpec((1, C), lambda b: (0, 0)),
            pl.BlockSpec((1, C), lambda b: (0, 0)),
            pl.BlockSpec((H, C, D), lambda b: (0, 0, 0)),
            pl.BlockSpec((H, C, D), lambda b: (0, 0, 0)),
            pl.BlockSpec((H, C, D), lambda b: (0, 0, 0)),
            pl.BlockSpec((H, D, C), lambda b: (0, 0, 0)),
            pl.BlockSpec((1, C), lambda b: (0, 0)),
            pl.BlockSpec((1, C), lambda b: (0, 0)),
            pl.BlockSpec((1, C), lambda b: (0, 0)),
            pl.BlockSpec((C, Hd), lambda b: (0, 0)),
            pl.BlockSpec((1, Hd), lambda b: (0, 0)),
            pl.BlockSpec((Hd, C), lambda b: (0, 0)),
            pl.BlockSpec((1, C), lambda b: (0, 0)),
        ],
        out_specs=pl.BlockSpec((1, Np, C), lambda b: (b, 0, 0)),
        compiler_params=_cparams(1),
    )(x.astype(jnp.float32), pos.astype(jnp.float32), mask.astype(jnp.float32),
      ln1w, ln1b, qw, kw, vw, pw, pb, ln2w, ln2b, w1, b1, w2, b2)


def fused_layernorm(x2d, g, b):
    """Row-tiled LayerNorm over the last dim (final per-level norm)."""
    M, C = x2d.shape
    gw = g.reshape(1, C).astype(jnp.float32)
    bw = b.reshape(1, C).astype(jnp.float32)
    tm = _row_tile(M)
    mp = pl.cdiv(M, tm) * tm
    xp = _pad_rows(x2d.astype(jnp.float32), mp)

    def kernel(x_ref, g_ref, b_ref, o_ref):
        o_ref[...] = _ln(x_ref[...], g_ref[...], b_ref[...])

    out = pl.pallas_call(
        kernel,
        out_shape=jax.ShapeDtypeStruct((mp, C), jnp.float32),
        grid=(mp // tm,),
        in_specs=[
            pl.BlockSpec((tm, C), lambda i: (i, 0)),
            pl.BlockSpec((1, C), lambda i: (0, 0)),
            pl.BlockSpec((1, C), lambda i: (0, 0)),
        ],
        out_specs=pl.BlockSpec((tm, C), lambda i: (i, 0)),
        compiler_params=_cparams(1),
    )(xp, gw, bw)
    return out[:M]


# ------------------------------------------------------------------------ H_Encoder fwd

def h_encoder_forward(params, neighborhoods, centers, idxs, config, eval_mode=False):
    L = len(centers)
    B, G_last, _ = centers[-1].shape

    # ---- random masking + hierarchical mask propagation (host-side, mirrors PyTorch) --
    bool_masked_pos = []
    num_mask = int(config["mask_ratio"] * G_last)
    if eval_mode:
        bool_masked_pos.append(np.zeros((B, G_last), dtype=bool))
    else:
        overall = np.zeros((B, G_last))
        for i in range(B):
            m = np.hstack([np.zeros(G_last - num_mask), np.ones(num_mask)])
            np.random.shuffle(m)
            overall[i, :] = m
        bool_masked_pos.append(overall.astype(bool))
    for i in range(L - 1, 0, -1):
        b, g, k, _ = neighborhoods[i].shape
        idx = np.asarray(idxs[i]).reshape(b * g, -1)
        vis = (~bool_masked_pos[-1]).reshape(-1).astype(np.int64)[:, None]
        idx_masked = (vis * idx).reshape(-1).astype(np.int64)
        masked_pos = np.ones(b * centers[i - 1].shape[1])
        masked_pos[idx_masked] = 0                       # torch .scatter(0, idx_masked, 0)
        bool_masked_pos.append(masked_pos.astype(bool).reshape(b, centers[i - 1].shape[1]))
    bool_masked_pos.reverse()

    x_vis_padded, mask_vis_list, mtl_list = [], [], []
    xyz_dist = None
    xyz_dist_len = -1
    x_vis = None

    for i in range(L):
        if i == 0:
            group_input_tokens = token_embed_forward(params["token_embed"][0],
                                                     neighborhoods[0])
        else:
            b, g1, _ = x_vis.shape
            _, g2, k2, _ = neighborhoods[i].shape
            flat = x_vis.reshape(b * g1, -1)
            gathered = jnp.take(flat,
                                jnp.asarray(idxs[i]).reshape(-1).astype(jnp.int32), axis=0)
            x_vis_neighborhoods = gathered.reshape(b, g2, k2, -1)
            group_input_tokens = token_embed_forward(params["token_embed"][i],
                                                     x_vis_neighborhoods)

        bool_vis_pos = ~bool_masked_pos[i]                       # (B, G) numpy
        batch_size, seq_len, C = group_input_tokens.shape
        vis_len = bool_vis_pos.sum(axis=1)
        mtl = int(vis_len.max())                                 # reference max_tokens_len
        # Shape-static padded token count (depends only on the group count), so the
        # Mosaic kernels never recompile when the random mask changes.
        Np = max(8, _round8(seq_len))

        vis_idx = np.zeros((batch_size, Np), np.int32)
        valid = np.zeros((batch_size, Np), np.float32)
        inv_idx = np.zeros((batch_size, seq_len), np.int32)
        for bz in range(batch_size):
            ids = np.where(bool_vis_pos[bz])[0]
            lv = ids.shape[0]
            vis_idx[bz, :lv] = ids
            valid[bz, :lv] = 1.0
            inv_idx[bz, ids] = np.arange(lv)
        vis_idx_j = jnp.asarray(vis_idx)
        valid_j = jnp.asarray(valid)

        x_pad = jnp.take_along_axis(
            group_input_tokens,
            jnp.broadcast_to(vis_idx_j[:, :, None], (batch_size, Np, C)),
            axis=1) * valid_j[:, :, None]
        masked_center = jnp.take_along_axis(
            centers[i],
            jnp.broadcast_to(vis_idx_j[:, :, None], (batch_size, Np, 3)),
            axis=1) * valid_j[:, :, None]
        mask_vis = 1.0 - valid_j[:, :, None] * valid_j[:, None, :]   # 1 == not-both-visible

        if config["local_radius"][i] > 0:
            # reference quirk: distances recomputed only when max_tokens_len changes
            if xyz_dist is None or xyz_dist_len != mtl:
                diff = masked_center[:, :, None, :] - masked_center[:, None, :, :]
                xyz_dist = jnp.sqrt(jnp.sum(diff * diff, axis=-1))
                xyz_dist_len = mtl
            d = xyz_dist
            if d.shape[1] < Np:
                pad = Np - d.shape[1]
                d = jnp.pad(d, ((0, 0), (0, pad), (0, pad)))
            elif d.shape[1] > Np:
                d = d[:, :Np, :Np]
            mask_radius = (d >= config["local_radius"][i]).astype(jnp.float32)
            mask_vis_att = mask_radius * mask_vis
        else:
            mask_vis_att = mask_vis
        # tokens beyond the reference's max_tokens_len do not exist there -> fully masked
        beyond = np.arange(Np) >= mtl
        extra = np.logical_or(beyond[:, None], beyond[None, :]).astype(np.float32)
        mask_vis_att = jnp.maximum(mask_vis_att, jnp.asarray(extra)[None])

        pos = pos_embed_forward(
            params["pos_embed"][i],
            masked_center.reshape(batch_size * Np, 3),
        ).reshape(batch_size, Np, C)

        xv = x_pad
        for blk in params["blocks"][i]:          # drop_path rate 0 -> identity (exact)
            xv = encoder_block_forward(blk, xv, pos, mask_vis_att, config["num_heads"])
        x_vis_padded.append(xv)
        mtl_list.append(mtl)
        mask_vis_list.append(mask_vis[:, :mtl, 0] == 0)

        if i < L - 1:
            # scatter transformer outputs back into the full group-token tensor
            inv_idx_j = jnp.asarray(inv_idx)
            gathered_back = jnp.take_along_axis(
                xv,
                jnp.broadcast_to(inv_idx_j[:, :, None], (batch_size, seq_len, C)),
                axis=1)
            vis_mask_j = jnp.asarray(bool_vis_pos)[:, :, None]
            x_vis = jnp.where(vis_mask_j, gathered_back, group_input_tokens)

    x_vis_list = []
    for i in range(L):
        xv = x_vis_padded[i]
        B_, Npi, C_ = xv.shape
        ln = params["norms"][i]
        normed = fused_layernorm(xv.reshape(B_ * Npi, C_), ln["w"], ln["b"])
        x_vis_list.append(normed.reshape(B_, Npi, C_)[:, :mtl_list[i], :])

    return x_vis_list, mask_vis_list, [jnp.asarray(m) for m in bool_masked_pos]


# ------------------------------------------------------------------------------ init / io

def init_params(key, config):
    dims = config["encoder_dims"]
    depths = config["encoder_depths"]
    L = len(dims)
    keys = iter(jax.random.split(key, 512))

    def tn(shape, std=0.02):
        return (std * jax.random.truncated_normal(next(keys), -2.0, 2.0, shape)
                ).astype(jnp.float32)

    params = {"token_embed": [], "pos_embed": [], "blocks": [], "norms": []}
    for i in range(L):
        in_c = 3 if i == 0 else dims[i - 1]
        oc = dims[i]
        params["token_embed"].append({
            "conv1_w": tn((in_c, oc // 2)), "conv1_b": jnp.zeros((oc // 2,)),
            "bn1_w": jnp.ones((oc // 2,)), "bn1_b": jnp.zeros((oc // 2,)),
            "conv2_w": tn((oc // 2, oc // 2)), "conv2_b": jnp.zeros((oc // 2,)),
            "conv3_w": tn((oc, oc)), "conv3_b": jnp.zeros((oc,)),
            "bn2_w": jnp.ones((oc,)), "bn2_b": jnp.zeros((oc,)),
            "conv4_w": tn((oc, oc)), "conv4_b": jnp.zeros((oc,)),
        })
        params["pos_embed"].append({
            "w1": tn((3, oc)), "b1": jnp.zeros((oc,)),
            "w2": tn((oc, oc)), "b2": jnp.zeros((oc,)),
        })
        blocks = []
        for _ in range(depths[i]):
            blocks.append({
                "ln1_w": jnp.ones((oc,)), "ln1_b": jnp.zeros((oc,)),
                "qkv_w": tn((oc, 3 * oc)),
                "proj_w": tn((oc, oc)), "proj_b": jnp.zeros((oc,)),
                "ln2_w": jnp.ones((oc,)), "ln2_b": jnp.zeros((oc,)),
                "fc1_w": tn((oc, 4 * oc)), "fc1_b": jnp.zeros((4 * oc,)),
                "fc2_w": tn((4 * oc, oc)), "fc2_b": jnp.zeros((oc,)),
            })
        params["blocks"].append(blocks)
        params["norms"].append({"w": jnp.ones((oc,)), "b": jnp.zeros((oc,))})
    return params


def knn_idx(query, ref, k):
    """Per-batch k-NN indices, flattened with batch offsets (as in Point-M2AE Group)."""
    B, Gq, _ = query.shape
    Gr = ref.shape[1]
    out = np.zeros((B, Gq, k), dtype=np.int64)
    for b in range(B):
        d = np.linalg.norm(query[b][:, None, :] - ref[b][None, :, :], axis=-1)
        out[b] = np.argsort(d, axis=-1)[:, :k] + b * Gr
    return out


if __name__ == "__main__":
    np.random.seed(0)
    key = jax.random.PRNGKey(0)

    config = dict(
        mask_ratio=0.6,
        encoder_depths=[1, 1, 1],
        encoder_dims=[16, 32, 64],
        local_radius=[0.32, 0.64, 1.28],
        num_heads=4,
        drop_path_rate=0.0,      # DropPath -> identity (exact)
    )

    B = 2
    G = [16, 8, 4]      # groups per hierarchy level
    K = [8, 8, 8]       # neighbors per group

    k0, k1, k2, k3, kp = jax.random.split(key, 5)
    centers0 = jax.random.uniform(k0, (B, G[0], 3), jnp.float32)
    centers1 = centers0[:, :G[1], :]
    centers2 = centers1[:, :G[2], :]
    centers = [centers0, centers1, centers2]

    neighborhoods = [
        jax.random.normal(k1, (B, G[0], K[0], 3), jnp.float32) * 0.05,
        jax.random.normal(k2, (B, G[1], K[1], 3), jnp.float32) * 0.05,
        jax.random.normal(k3, (B, G[2], K[2], 3), jnp.float32) * 0.05,
    ]

    c_np = [np.asarray(c) for c in centers]
    idxs = [
        np.zeros((B, G[0], K[0]), np.int64),        # idxs[0] is unused by the forward
        knn_idx(c_np[1], c_np[0], K[1]),
        knn_idx(c_np[2], c_np[1], K[2]),
    ]

    params = init_params(kp, config)

    x_vis_list, mask_vis_list, bool_masked_pos = h_encoder_forward(
        params, neighborhoods, centers, idxs, config, eval_mode=False)

    for x in x_vis_list:
        jax.block_until_ready(x)
    for m in mask_vis_list:
        jax.block_until_ready(m)

    print("KERNEL_OK")
</pallas_src>

<mosaic_0001>
module attributes {stable_mosaic.version = 11 : i64} {
  func.func @kernel(%arg0: i32, %arg1: memref<128x3xf32, #tpu.memory_space<vmem>>, %arg2: memref<3x8xbf16, #tpu.memory_space<vmem>>, %arg3: memref<1x8xf32, #tpu.memory_space<vmem>>, %arg4: memref<128x8xbf16, #tpu.memory_space<vmem>>, %arg5: memref<1x2x8xf32, #tpu.memory_space<vmem>>) attributes {dimension_semantics = [#tpu.dimension_semantics<parallel>], iteration_bounds = array<i64: 2>, scalar_prefetch = 0 : i64, scratch_operands = 0 : i64, tpu.core_type = #tpu.core_type<tc>, window_params = [{transform_indices = @transform_0, window_bounds = array<i64: 128, 3>}, {pipeline_mode = #tpu.pipeline_mode<synchronous>, transform_indices = @transform_1, window_bounds = array<i64: 3, 8>}, {pipeline_mode = #tpu.pipeline_mode<synchronous>, transform_indices = @transform_2, window_bounds = array<i64: 1, 8>}, {transform_indices = @transform_3, window_bounds = array<i64: 128, 8>}, {transform_indices = @transform_4, window_bounds = array<i64: 1, 2, 8>}]} {
    %c0 = arith.constant 0 : index
    %c0_0 = arith.constant 0 : index
    %0 = vector.load %arg1[%c0, %c0_0] : memref<128x3xf32, #tpu.memory_space<vmem>>, vector<128x3xf32>
    %1 = arith.truncf %0 : vector<128x3xf32> to vector<128x3xbf16>
    %c0_1 = arith.constant 0 : index
    %c0_2 = arith.constant 0 : index
    %2 = vector.load %arg2[%c0_1, %c0_2] : memref<3x8xbf16, #tpu.memory_space<vmem>>, vector<3x8xbf16>
    %cst = arith.constant dense<0.000000e+00> : vector<128x8xf32>
    %3 = tpu.matmul %1, %2, %cst {dimension_numbers = #tpu.dot_dimension_numbers<[1], [0], [0], [1], [0, 0, 1, 1], [], []>} : vector<128x3xbf16>, vector<3x8xbf16>, vector<128x8xf32> -> vector<128x8xf32>
    %c0_3 = arith.constant 0 : index
    %c0_4 = arith.constant 0 : index
    %4 = vector.load %arg3[%c0_3, %c0_4] : memref<1x8xf32, #tpu.memory_space<vmem>>, vector<1x8xf32>
    %5 = vector.broadcast %4 : vector<1x8xf32> to vector<128x8xf32>
    %6 = arith.addf %3, %5 : vector<128x8xf32>
    %7 = arith.truncf %6 : vector<128x8xf32> to vector<128x8xbf16>
    %c0_5 = arith.constant 0 : index
    %c0_6 = arith.constant 0 : index
    %8 = vector.load %arg4[%c0_5, %c0_6] : memref<128x8xbf16, #tpu.memory_space<vmem>>, vector<128x8xbf16>
    tpu.vector_store %arg4[%c0_5, %c0_6], %7 {strides = array<i32>} : memref<128x8xbf16, #tpu.memory_space<vmem>>, vector<128x8xbf16>,
    %cst_7 = arith.constant dense<0.000000e+00> : vector<8xf32>
    %9 = vector.multi_reduction <add>, %6, %cst_7 [0] : vector<128x8xf32> to vector<8xf32>
    %10 = vector.shape_cast %9 : vector<8xf32> to vector<1x8xf32>
    %11 = arith.mulf %6, %6 : vector<128x8xf32>
    %cst_8 = arith.constant dense<0.000000e+00> : vector<8xf32>
    %12 = vector.multi_reduction <add>, %11, %cst_8 [0] : vector<128x8xf32> to vector<8xf32>
    %13 = vector.shape_cast %12 : vector<8xf32> to vector<1x8xf32>
    %14 = tpu.concatenate %10, %13 in 0 : vector<1x8xf32>, vector<1x8xf32> -> vector<2x8xf32>
    %c0_9 = arith.constant 0 : index
    %c0_10 = arith.constant 0 : index
    %c0_11 = arith.constant 0 : index
    %15 = vector.load %arg5[%c0_9, %c0_10, %c0_11] : memref<1x2x8xf32, #tpu.memory_space<vmem>>, vector<1x2x8xf32>
    %16 = vector.shape_cast %15 : vector<1x2x8xf32> to vector<2x8xf32>
    %17 = vector.shape_cast %14 : vector<2x8xf32> to vector<1x2x8xf32>
    tpu.vector_store %arg5[%c0_9, %c0_10, %c0_11], %17 {strides = array<i32>} : memref<1x2x8xf32, #tpu.memory_space<vmem>>, vector<1x2x8xf32>,
    return
  }
  func.func @transform_0(%arg0: i32) -> (i32, i32) {
    %c0_i32 = arith.constant 0 : i32
    %c0_i32_0 = arith.constant 0 : i32
    return %arg0, %c0_i32 : i32, i32
  }
  func.func @transform_1(%arg0: i32) -> (i32, i32) {
    %c0_i32 = arith.constant 0 : i32
    %c0_i32_0 = arith.constant 0 : i32
    %c0_i32_1 = arith.constant 0 : i32
    return %c0_i32, %c0_i32_0 : i32, i32
  }
  func.func @transform_2(%arg0: i32) -> (i32, i32) {
    %c0_i32 = arith.constant 0 : i32
    %c0_i32_0 = arith.constant 0 : i32
    %c0_i32_1 = arith.constant 0 : i32
    return %c0_i32, %c0_i32_0 : i32, i32
  }
  func.func @transform_3(%arg0: i32) -> (i32, i32) {
    %c0_i32 = arith.constant 0 : i32
    %c0_i32_0 = arith.constant 0 : i32
    return %arg0, %c0_i32 : i32, i32
  }
  func.func @transform_4(%arg0: i32) -> (i32, i32, i32) {
    %c0_i32 = arith.constant 0 : i32
    %c0_i32_0 = arith.constant 0 : i32
    %c0_i32_1 = arith.constant 0 : i32
    return %arg0, %c0_i32, %c0_i32_0 : i32, i32, i32
  }
}

</mosaic_0001>

<llo_original>
// kernel: tpu_custom_call.1
$region0: #{tpu_custom_call.1}
  #allocation0 [shape = 'u32[]', space=smem, size = 0x4, offset = 0x4, fixed_abs, tag = 'smem constant byte address 0x4 - core index']
  #allocation1 [shape = 'u32[144,128]{1,0:T(1,128)}', space=vmem, size = 0x12000, scoped, tag = 'internal scratch']
  %s0 = inlined_call_operand.vmem [shape: f32[256,3], index: 0, kind: input, shape index: {}]
  %s1 = inlined_call_operand.vmem [shape: bf16[3,8], index: 1, kind: input, shape index: {}]
  %s2 = inlined_call_operand.vmem [shape: f32[1,8], index: 2, kind: input, shape index: {}]
  %s3 = inlined_call_operand.vmem [shape: bf16[256,8], index: 3, kind: output, shape index: {0}]
  %s4 = inlined_call_operand.hbm [shape: f32[2,2,8], index: 4, kind: output, shape index: {1}]
  %5 = xla_tuple %s3, %s4
  %s6 = sld [smem:[#allocation0]]
  $region53: #{tpu_custom_call.1} parent=0
    _
  %s8 = ssub.s32 1, %s6
  %s9 = scalar_select 0, %s8, %s6
  $region1: #{tpu_custom_call.1} parent=0
    #allocation2 [shape = 'u8[2048]{0}', space=vmem, size = 0x800, scoped, tag = 'output window, operand 1']
    #allocation3 [shape = 's32[2]{0}', space=sflag, size = 0x8, scoped, tag = 'scoped memory for tpu_custom_call.1']
    %10 = vsyncpa [#allocation3], 0
    %s11 = scalar_lea.sflag [#allocation3], 1
    %12 = vsyncpa %s11, 0
    loop: start=0, step=1, limit=4
    $region2: #{tpu_custom_call.1} parent=1 // loop_pre_header
      _
    $region3: #{tpu_custom_call.1} parent=1 // loop_header
      %s14 = sphi 0, %s18
      %p15 = scmp.ge.s32.totalorder %s14, 4
      %s24 = sphi 0, %s26
      %s27 = sphi 0, %s24
      %s28 = sphi 0, %s27
      %s44 = sphi 0, %s28
      %s48 = sphi 0, %s48
      %s50 = sphi 0, %s48
      %s51 = sphi 0, %s50
      %s65 = sphi 0, %s51
      %s69 = sphi 0, %s69
      %s71 = sphi 0, %s69
      %s72 = sphi 0, %s71
      %s86 = sphi 0, %s72
      %s92 = sphi 0, %s94
      %s95 = sphi 0, %s92
      %s96 = sphi 0, %s95
      %s112 = sphi 0, %s96
      %s118 = sphi 0, %s120
      %s121 = sphi 0, %s118
      %s122 = sphi 0, %s121
      %s138 = sphi 0, %s122
    $region4: #{tpu_custom_call.1} parent=1 // loop_header_branch
      %17 = sbr.rel (%p15) target = $region8
    $region5: #{tpu_custom_call.1} parent=1 // loop_body
      %s19 = ssub.s32 %s14, 1
      %s20 = ssub.s32 %s14, 2
      %s21 = sadd.s32 %s14, 1
      %s22 = ssub.s32 %s14, %s21
      %p23 = scmp.eq.s32.totalorder %s22, 0
      %s25 = sadd.s32 %s24, 1
      %s26 = scalar_select %p23, %s24, %s25
      %p29 = pneg %p23
      %p30 = scmp.eq.s32.totalorder %s14, 1
      %p31 = por %p29, %p30
      %p32 = scmp.ne.s32.totalorder %s24, %s27
      %p33 = scmp.eq.s32.totalorder %s14, 0
      %p34 = por %p32, %p33
      %p35 = scmp.ne.s32.totalorder %s24, %s27
      %p36 = scmp.eq.s32.totalorder %s19, 1
      %p37 = por %p35, %p36
      %p38 = scmp.ne.s32.totalorder %s27, %s28
      %p39 = scmp.eq.s32.totalorder %s19, 0
      %p40 = por %p38, %p39
      %p41 = scmp.ne.s32.totalorder %s27, %s28
      %p42 = scmp.eq.s32.totalorder %s20, 1
      %p43 = por %p41, %p42
      %p45 = scmp.ne.s32.totalorder %s28, %s44
      %p46 = scmp.eq.s32.totalorder %s20, 0
      %p47 = por %p45, %p46
      %s49 = sadd.s32 %s48, 1
      %p52 = scmp.eq.s32.totalorder %s14, 1
      %p53 = scmp.ne.s32.totalorder %s48, %s50
      %p54 = scmp.eq.s32.totalorder %s14, 0
      %p55 = por %p53, %p54
      %p56 = scmp.ne.s32.totalorder %s48, %s50
      %p57 = scmp.eq.s32.totalorder %s19, 1
      %p58 = por %p56, %p57
      %p59 = scmp.ne.s32.totalorder %s50, %s51
      %p60 = scmp.eq.s32.totalorder %s19, 0
      %p61 = por %p59, %p60
      %p62 = scmp.ne.s32.totalorder %s50, %s51
      %p63 = scmp.eq.s32.totalorder %s20, 1
      %p64 = por %p62, %p63
      %p66 = scmp.ne.s32.totalorder %s51, %s65
      %p67 = scmp.eq.s32.totalorder %s20, 0
      %p68 = por %p66, %p67
      %s70 = sadd.s32 %s69, 1
      %p73 = scmp.eq.s32.totalorder %s14, 1
      %p74 = scmp.ne.s32.totalorder %s69, %s71
      %p75 = scmp.eq.s32.totalorder %s14, 0
      %p76 = por %p74, %p75
      %p77 = scmp.ne.s32.totalorder %s69, %s71
      %p78 = scmp.eq.s32.totalorder %s19, 1
      %p79 = por %p77, %p78
      %p80 = scmp.ne.s32.totalorder %s71, %s72
      %p81 = scmp.eq.s32.totalorder %s19, 0
      %p82 = por %p80, %p81
      %p83 = scmp.ne.s32.totalorder %s71, %s72
      %p84 = scmp.eq.s32.totalorder %s20, 1
      %p85 = por %p83, %p84
      %p87 = scmp.ne.s32.totalorder %s72, %s86
      %p88 = scmp.eq.s32.totalorder %s20, 0
      %p89 = por %p87, %p88
      %s90 = ssub.s32 %s14, %s21
      %p91 = scmp.eq.s32.totalorder %s90, 0
      %s93 = sadd.s32 %s92, 1
      %s94 = scalar_select %p91, %s92, %s93
      %p97 = pneg %p91
      %p98 = scmp.eq.s32.totalorder %s14, 1
      %p99 = por %p97, %p98
      %p100 = scmp.ne.s32.totalorder %s92, %s95
      %p101 = scmp.eq.s32.totalorder %s14, 0
      %p102 = por %p100, %p101
      %p103 = scmp.ne.s32.totalorder %s92, %s95
      %p104 = scmp.eq.s32.totalorder %s19, 1
      %p105 = por %p103, %p104
      %p106 = scmp.ne.s32.totalorder %s95, %s96
      %p107 = scmp.eq.s32.totalorder %s19, 0
      %p108 = por %p106, %p107
      %p109 = scmp.ne.s32.totalorder %s95, %s96
      %p110 = scmp.eq.s32.totalorder %s20, 1
      %p111 = por %p109, %p110
      %p113 = scmp.ne.s32.totalorder %s96, %s112
      %p114 = scmp.eq.s32.totalorder %s20, 0
      %p115 = por %p113, %p114
      %s116 = ssub.s32 %s14, %s21
      %p117 = scmp.eq.s32.totalorder %s116, 0
      %s119 = sadd.s32 %s118, 1
      %s120 = scalar_select %p117, %s118, %s119
      %p123 = pneg %p117
      %p124 = scmp.eq.s32.totalorder %s14, 1
      %p125 = por %p123, %p124
      %p126 = scmp.ne.s32.totalorder %s118, %s121
      %p127 = scmp.eq.s32.totalorder %s14, 0
      %p128 = por %p126, %p127
      %p129 = scmp.ne.s32.totalorder %s118, %s121
      %p130 = scmp.eq.s32.totalorder %s19, 1
      %p131 = por %p129, %p130
      %p132 = scmp.ne.s32.totalorder %s121, %s122
      %p133 = scmp.eq.s32.totalorder %s19, 0
      %p134 = por %p132, %p133
      %p135 = scmp.ne.s32.totalorder %s121, %s122
      %p136 = scmp.eq.s32.totalorder %s20, 1
      %p137 = por %p135, %p136
      %p139 = scmp.ne.s32.totalorder %s122, %s138
      %p140 = scmp.eq.s32.totalorder %s20, 0
      %p141 = por %p139, %p140
      %p142 = scmp.le.s32.totalorder 1, %s14
      %p143 = scmp.lt.s32.totalorder %s14, 3
      %p144 = pnand %p142, %p143
      %p145 = pneg %p144
      // Predicated region
      $region9: #{tpu_custom_call.1} parent=5 // pred_check
        _
      $region10: #{tpu_custom_call.1} parent=5 // pred_check_branch
        %147 = sbr.rel (%p144) target = $region12
      $region11: #{tpu_custom_call.1} parent=5 // pred_region
        %s148 = ssub.s32 %s14, 1
        // Predicated region
        $region13: #{tpu_custom_call.1} parent=11 // pred_check
          %p149 = pneg %p61
        $region14: #{tpu_custom_call.1} parent=11 // pred_check_branch
          %151 = sbr.rel (%p149) target = $region16
        $region15: #{tpu_custom_call.1} parent=11 // pred_region
          _
        $region16: #{tpu_custom_call.1} parent=11 // pred_fallthru
          _
        // Predicated region
        $region17: #{tpu_custom_call.1} parent=11 // pred_check
          %p152 = pneg %p82
        $region18: #{tpu_custom_call.1} parent=11 // pred_check_branch
          %154 = sbr.rel (%p152) target = $region20
        $region19: #{tpu_custom_call.1} parent=11 // pred_region
          _
        $region20: #{tpu_custom_call.1} parent=11 // pred_fallthru
          _
      $region12: #{tpu_custom_call.1} parent=5 // pred_fallthru
        _
      %p155 = scmp.lt.s32.totalorder %s14, 2
      // Predicated region
      $region21: #{tpu_custom_call.1} parent=5 // pred_check
        %p156 = pneg %p155
      $region22: #{tpu_custom_call.1} parent=5 // pred_check_branch
        %158 = sbr.rel (%p156) target = $region24
      $region23: #{tpu_custom_call.1} parent=5 // pred_region
        // Predicated region
        $region25: #{tpu_custom_call.1} parent=23 // pred_check
          %p159 = pneg %p34
        $region26: #{tpu_custom_call.1} parent=23 // pred_check_branch
          %161 = sbr.rel (%p159) target = $region28
        $region27: #{tpu_custom_call.1} parent=23 // pred_region
          %s162 = smul.u32 16, %s14
          %p163 = scmp.lt.s32.totalorder %s162, 31
          %s164 = scalar_select %p163, %s162, 31
          %s165 = smul.addr %s164, 8
          %s166 = scalar_lea.vmem %s0, %s165
          %s167 = smul.u32 16, %s14
        $region28: #{tpu_custom_call.1} parent=23 // pred_fallthru
          _
      $region24: #{tpu_custom_call.1} parent=5 // pred_fallthru
        _
      %p168 = scmp.le.s32.totalorder 1, %s14
      %p169 = scmp.lt.s32.totalorder %s14, 3
      %p170 = pnand %p168, %p169
      %p171 = pneg %p170
      // Predicated region
      $region29: #{tpu_custom_call.1} parent=5 // pred_check
        _
      $region30: #{tpu_custom_call.1} parent=5 // pred_check_branch
        %173 = sbr.rel (%p170) target = $region32
      $region31: #{tpu_custom_call.1} parent=5 // pred_region
        %s174 = ssub.s32 %s14, 1
        %s175 = smul.u32 16, %s19
        %p176 = scmp.lt.s32.totalorder %s175, 31
        %s177 = scalar_select %p176, %s175, 31
        %s178 = smul.addr %s177, 8
        %s179 = scalar_lea.vmem %s0, %s178
        %p180 = pneg %p40
        %p181 = pneg %p37
        %p182 = pneg %p61
        %p183 = pneg %p58
        %p184 = pneg %p82
        %p185 = pneg %p79
        %p186 = pneg %p108
        %p187 = pneg %p105
        %s188 = smul.u32 16, %s19
        %p189 = scmp.lt.s32.totalorder %s188, 31
        %s190 = scalar_select %p189, %s188, 31
        %s191 = smul.addr %s190, 4
        %s192 = scalar_lea.vmem %s3, %s191
        %p193 = pneg %p134
        %p194 = pneg %p131
        %s195 = sand.u32 %s121, 1
        %s196 = scalar_lea.sflag [#allocation3], %s195
        %s197 = sand.u32 %s121, 1
        %s198 = smul.addr %s197, 2
        %s199 = scalar_lea.vmem [#allocation2], %s198
        %s200 = smul.u32 16, %s19
        %p201 = scmp.lt.s32.totalorder %s200, 31
        %s202 = scalar_select %p201, %s200, 31
        %s203 = smul.addr %s202, 8
        %s204 = scalar_lea.vmem %s0, %s203
        %s205 = smul.u32 16, %s19
        %s206 = smul.u32 16, %s19
        %p207 = scmp.lt.s32.totalorder %s206, 31
        %s208 = scalar_select %p207, %s206, 31
        %s209 = smul.addr %s208, 4
        %s210 = scalar_lea.vmem %s3, %s209
        %s211 = smul.u32 16, %s19
        %v213 = vld [vmem:[%s204] sm:$0xff]
        %v214 = vld [vmem:[%s204 + $0x8] sm:$0xff]
        %v215 = vld [vmem:[%s204 + $0x10] sm:$0xff]
        %v216 = vld [vmem:[%s204 + $0x18] sm:$0xff]
        %v217 = vld [vmem:[%s204 + $0x20] sm:$0xff]
        %v218 = vld [vmem:[%s204 + $0x28] sm:$0xff]
        %v219 = vld [vmem:[%s204 + $0x30] sm:$0xff]
        %v220 = vld [vmem:[%s204 + $0x38] sm:$0xff]
        %v221 = vld [vmem:[%s204 + $0x40] sm:$0xff]
        %v222 = vld [vmem:[%s204 + $0x48] sm:$0xff]
        %v223 = vld [vmem:[%s204 + $0x50] sm:$0xff]
        %v224 = vld [vmem:[%s204 + $0x58] sm:$0xff]
        %v225 = vld [vmem:[%s204 + $0x60] sm:$0xff]
        %v226 = vld [vmem:[%s204 + $0x68] sm:$0xff]
        %v227 = vld [vmem:[%s204 + $0x70] sm:$0xff]
        %v228 = vld [vmem:[%s204 + $0x78] sm:$0xff]
        %v229 = vpack.c.bf16 %v214, %v213
        %v230 = vpack.c.bf16 %v216, %v215
        %v231 = vpack.c.bf16 %v218, %v217
        %v232 = vpack.c.bf16 %v220, %v219
        %v233 = vpack.c.bf16 %v222, %v221
        %v234 = vpack.c.bf16 %v224, %v223
        %v235 = vpack.c.bf16 %v226, %v225
        %v236 = vpack.c.bf16 %v228, %v227
        %v237 = vld [vmem:[%s1] sm:$0x3]
        %v238 = vld [vmem:[%s2] sm:$0x1]
        %v240 = vlaneseq
        %v241 = vshrl.u32 %v240, 7
        %v242 = vsub.s32 0, %v241
        %v243 = vrot.slane %v238, %v242
        %vm245 = vcmask 23552
        %v247 = vsel %vm245, %v229, 0
        %v250 = vsel %vm245, %v230, 0
        %v253 = vsel %vm245, %v231, 0
        %v256 = vsel %vm245, %v232, 0
        %v259 = vsel %vm245, %v233, 0
        %v262 = vsel %vm245, %v234, 0
        %v265 = vsel %vm245, %v235, 0
        %v268 = vsel %vm245, %v236, 0
        %vm270 = vcmask 1040384
        %vm271 = vcmask 1041408
        %v272 = vsel %vm270, 4294967295, 65535
        %v273 = vsel %vm271, %v272, 0
        %v275 = vand.u32 %v237, %v273
        %277 = vmatprep.subr.bf16.mxu0 0
        %278 = vmatpush1.bf16.msra.mxu0 %v275
        %279 = vmatprep.subr.bf16.mxu0 0
        %280 = vmatpush1.bf16.msra.mxu0 0
        %281 = vmatprep.subr.bf16.mxu0 0
        %282 = vmatpush1.bf16.msra.mxu0 0
        %283 = vmatprep.subr.bf16.mxu0 0
        %284 = vmatpush1.bf16.msra.mxu0 0
        %285 = vmatprep.subr.bf16.mxu0 0
        %286 = vmatpush1.bf16.msra.mxu0 0
        %287 = vmatprep.subr.bf16.mxu0 0
        %288 = vmatpush1.bf16.msra.mxu0 0
        %289 = vmatprep.subr.bf16.mxu0 0
        %290 = vmatpush1.bf16.msra.mxu0 0
        %291 = vmatprep.subr.bf16.mxu0 0
        %292 = vmatpush1.bf16.msra.mxu0 0
        %293 = vmatprep.subr.bf16.mxu0 0
        %294 = vmatpush1.bf16.msra.mxu0 0
        %295 = vmatprep.subr.bf16.mxu0 0
        %296 = vmatpush1.bf16.msra.mxu0 0
        %297 = vmatprep.subr.bf16.mxu0 0
        %298 = vmatpush1.bf16.msra.mxu0 0
        %299 = vmatprep.subr.bf16.mxu0 0
        %300 = vmatpush1.bf16.msra.mxu0 0
        %301 = vmatprep.subr.bf16.mxu0 0
        %302 = vmatpush1.bf16.msra.mxu0 0
        %303 = vmatprep.subr.bf16.mxu0 0
        %304 = vmatpush1.bf16.msra.mxu0 0
        %305 = vmatprep.subr.bf16.mxu0 0
        %306 = vmatpush1.bf16.msra.mxu0 0
        %307 = vmatprep.subr.bf16.mxu0 0
        %308 = vmatpush1.bf16.msra.mxu0 0
        %309 = vmatprep.mubr.bf16.mxu0 0
        %310 = vmatmul.mubr.bf16.gmra.mrb[0].mxu0 %v247
        %v311 = vpop.f32.mrb[0].mxu0
        %v312 = vadd.f32 %v243, %v311
        %v313 = vpop.f32.mrb[0].mxu0
        %v314 = vpop.f32.mrb[0].mxu0
        %v315 = vadd.f32 %v243, %v314
        %v316 = vpop.f32.mrb[0].mxu0
        %317 = vmatprep.mubr.bf16.mxu0 0
        %318 = vmatmul.mubr.bf16.gmra.mrb[0].mxu0 %v250
        %v319 = vpop.f32.mrb[0].mxu0
        %v320 = vadd.f32 %v243, %v319
        %v321 = vpop.f32.mrb[0].mxu0
        %v322 = vpop.f32.mrb[0].mxu0
        %v323 = vadd.f32 %v243, %v322
        %v324 = vpop.f32.mrb[0].mxu0
        %325 = vmatprep.mubr.bf16.mxu0 0
        %326 = vmatmul.mubr.bf16.gmra.mrb[0].mxu0 %v253
        %v327 = vpop.f32.mrb[0].mxu0
        %v328 = vadd.f32 %v243, %v327
        %v329 = vpop.f32.mrb[0].mxu0
        %v330 = vpop.f32.mrb[0].mxu0
        %v331 = vadd.f32 %v243, %v330
        %v332 = vpop.f32.mrb[0].mxu0
        %333 = vmatprep.mubr.bf16.mxu0 0
        %334 = vmatmul.mubr.bf16.gmra.mrb[0].mxu0 %v256
        %v335 = vpop.f32.mrb[0].mxu0
        %v336 = vadd.f32 %v243, %v335
        %v337 = vpop.f32.mrb[0].mxu0
        %v338 = vpop.f32.mrb[0].mxu0
        %v339 = vadd.f32 %v243, %v338
        %v340 = vpop.f32.mrb[0].mxu0
        %341 = vmatprep.mubr.bf16.mxu0 0
        %342 = vmatmul.mubr.bf16.gmra.mrb[0].mxu0 %v259
        %v343 = vpop.f32.mrb[0].mxu0
        %v344 = vadd.f32 %v243, %v343
        %v345 = vpop.f32.mrb[0].mxu0
        %v346 = vpop.f32.mrb[0].mxu0
        %v347 = vadd.f32 %v243, %v346
        %v348 = vpop.f32.mrb[0].mxu0
        %349 = vmatprep.mubr.bf16.mxu0 0
        %350 = vmatmul.mubr.bf16.gmra.mrb[0].mxu0 %v262
        %v351 = vpop.f32.mrb[0].mxu0
        %v352 = vadd.f32 %v243, %v351
        %v353 = vpop.f32.mrb[0].mxu0
        %v354 = vpop.f32.mrb[0].mxu0
        %v355 = vadd.f32 %v243, %v354
        %v356 = vpop.f32.mrb[0].mxu0
        %357 = vmatprep.mubr.bf16.mxu0 0
        %358 = vmatmul.mubr.bf16.gmra.mrb[0].mxu0 %v265
        %v359 = vpop.f32.mrb[0].mxu0
        %v360 = vadd.f32 %v243, %v359
        %v361 = vpop.f32.mrb[0].mxu0
        %v362 = vpop.f32.mrb[0].mxu0
        %v363 = vadd.f32 %v243, %v362
        %v364 = vpop.f32.mrb[0].mxu0
        %365 = vmatprep.mubr.bf16.mxu0 0
        %366 = vmatmul.mubr.bf16.gmra.mrb[0].mxu0 %v268
        %v367 = vpop.f32.mrb[0].mxu0
        %v368 = vadd.f32 %v243, %v367
        %v369 = vpop.f32.mrb[0].mxu0
        %v370 = vpop.f32.mrb[0].mxu0
        %v371 = vadd.f32 %v243, %v370
        %v372 = vpop.f32.mrb[0].mxu0
        %373 = vdwg.mxu0
        %v374 = vpack.c.bf16 %v315, %v312
        %v375 = vpack.c.bf16 %v323, %v320
        %v376 = vpack.c.bf16 %v331, %v328
        %v377 = vpack.c.bf16 %v339, %v336
        %v378 = vpack.c.bf16 %v347, %v344
        %v379 = vpack.c.bf16 %v355, %v352
        %v380 = vpack.c.bf16 %v363, %v360
        %v381 = vpack.c.bf16 %v371, %v368
        %v390 = vunpack.c.l.b16 %v374
        %v391 = vunpack.c.h.b16 %v374
        %v392 = vunpack.c.l.b16 %v375
        %v393 = vunpack.c.h.b16 %v375
        %v394 = vunpack.c.l.b16 %v376
        %v395 = vunpack.c.h.b16 %v376
        %v396 = vunpack.c.l.b16 %v377
        %v397 = vunpack.c.h.b16 %v377
        %v398 = vunpack.c.l.b16 %v378
        %v399 = vunpack.c.h.b16 %v378
        %v400 = vunpack.c.l.b16 %v379
        %v401 = vunpack.c.h.b16 %v379
        %v402 = vunpack.c.l.b16 %v380
        %v403 = vunpack.c.h.b16 %v380
        %v404 = vunpack.c.l.b16 %v381
        %v405 = vunpack.c.h.b16 %v381
        %v406 = vpack.c.b16 %v390, %v390
        %v407 = vpack.c.b16 %v391, %v391
        %v408 = vpack.c.b16 %v392, %v392
        %v409 = vpack.c.b16 %v393, %v393
        %v410 = vpack.c.b16 %v394, %v394
        %v411 = vpack.c.b16 %v395, %v395
        %v412 = vpack.c.b16 %v396, %v396
        %v413 = vpack.c.b16 %v397, %v397
        %v414 = vpack.c.b16 %v398, %v398
        %v415 = vpack.c.b16 %v399, %v399
        %v416 = vpack.c.b16 %v400, %v400
        %v417 = vpack.c.b16 %v401, %v401
        %v418 = vpack.c.b16 %v402, %v402
        %v419 = vpack.c.b16 %v403, %v403
        %v420 = vpack.c.b16 %v404, %v404
        %v421 = vpack.c.b16 %v405, %v405
        %vm438 = vcmask 60416
        %439 = vst.msk [vmem:[%s210] sm:$0xf] %vm438, %v406
        %440 = vst.msk [vmem:[%s210 + $0x4] sm:$0xf] %vm438, %v407
        %441 = vst.msk [vmem:[%s210 + $0x8] sm:$0xf] %vm438, %v408
        %442 = vst.msk [vmem:[%s210 + $0xc] sm:$0xf] %vm438, %v409
        %443 = vst.msk [vmem:[%s210 + $0x10] sm:$0xf] %vm438, %v410
        %444 = vst.msk [vmem:[%s210 + $0x14] sm:$0xf] %vm438, %v411
        %445 = vst.msk [vmem:[%s210 + $0x18] sm:$0xf] %vm438, %v412
        %446 = vst.msk [vmem:[%s210 + $0x1c] sm:$0xf] %vm438, %v413
        %447 = vst.msk [vmem:[%s210 + $0x20] sm:$0xf] %vm438, %v414
        %448 = vst.msk [vmem:[%s210 + $0x24] sm:$0xf] %vm438, %v415
        %449 = vst.msk [vmem:[%s210 + $0x28] sm:$0xf] %vm438, %v416
        %450 = vst.msk [vmem:[%s210 + $0x2c] sm:$0xf] %vm438, %v417
        %451 = vst.msk [vmem:[%s210 + $0x30] sm:$0xf] %vm438, %v418
        %452 = vst.msk [vmem:[%s210 + $0x34] sm:$0xf] %vm438, %v419
        %453 = vst.msk [vmem:[%s210 + $0x38] sm:$0xf] %vm438, %v420
        %454 = vst.msk [vmem:[%s210 + $0x3c] sm:$0xf] %vm438, %v421
        %vm455 = vcmask 64512
        %v456 = vsel %vm455, %v312, 0.0
        %v457 = vsel %vm455, %v315, 0.0
        %v458 = vadd.f32 %v456, %v457
        %v459 = vsel %vm455, %v320, 0.0
        %v460 = vadd.f32 %v458, %v459
        %v461 = vsel %vm455, %v323, 0.0
        %v462 = vadd.f32 %v460, %v461
        %v463 = vsel %vm455, %v328, 0.0
        %v464 = vadd.f32 %v462, %v463
        %v465 = vsel %vm455, %v331, 0.0
        %v466 = vadd.f32 %v464, %v465
        %v467 = vsel %vm455, %v336, 0.0
        %v468 = vadd.f32 %v466, %v467
        %v469 = vsel %vm455, %v339, 0.0
        %v470 = vadd.f32 %v468, %v469
        %v471 = vsel %vm455, %v344, 0.0
        %v472 = vadd.f32 %v470, %v471
        %v473 = vsel %vm455, %v347, 0.0
        %v474 = vadd.f32 %v472, %v473
        %v475 = vsel %vm455, %v352, 0.0
        %v476 = vadd.f32 %v474, %v475
        %v477 = vsel %vm455, %v355, 0.0
        %v478 = vadd.f32 %v476, %v477
        %v479 = vsel %vm455, %v360, 0.0
        %v480 = vadd.f32 %v478, %v479
        %v481 = vsel %vm455, %v363, 0.0
        %v482 = vadd.f32 %v480, %v481
        %v483 = vsel %vm455, %v368, 0.0
        %v484 = vadd.f32 %v482, %v483
        %v485 = vsel %vm455, %v371, 0.0
        %v486 = vadd.f32 %v484, %v485
        %v487 = vrot.slane %v486, 4
        %v488 = vadd.f32 %v486, %v487
        %v489 = vrot.slane %v488, 2
        %v490 = vadd.f32 %v488, %v489
        %v491 = vrot.slane %v490, 1
        %v492 = vadd.f32 %v490, %v491
        %v493 = vmul.f32 %v312, %v312
        %v494 = vmul.f32 %v315, %v315
        %v495 = vmul.f32 %v320, %v320
        %v496 = vmul.f32 %v323, %v323
        %v497 = vmul.f32 %v328, %v328
        %v498 = vmul.f32 %v331, %v331
        %v499 = vmul.f32 %v336, %v336
        %v500 = vmul.f32 %v339, %v339
        %v501 = vmul.f32 %v344, %v344
        %v502 = vmul.f32 %v347, %v347
        %v503 = vmul.f32 %v352, %v352
        %v504 = vmul.f32 %v355, %v355
        %v505 = vmul.f32 %v360, %v360
        %v506 = vmul.f32 %v363, %v363
        %v507 = vmul.f32 %v368, %v368
        %v508 = vmul.f32 %v371, %v371
        %v509 = vsel %vm455, %v493, 0.0
        %v510 = vsel %vm455, %v494, 0.0
        %v511 = vadd.f32 %v509, %v510
        %v512 = vsel %vm455, %v495, 0.0
        %v513 = vadd.f32 %v511, %v512
        %v514 = vsel %vm455, %v496, 0.0
        %v515 = vadd.f32 %v513, %v514
        %v516 = vsel %vm455, %v497, 0.0
        %v517 = vadd.f32 %v515, %v516
        %v518 = vsel %vm455, %v498, 0.0
        %v519 = vadd.f32 %v517, %v518
        %v520 = vsel %vm455, %v499, 0.0
        %v521 = vadd.f32 %v519, %v520
        %v522 = vsel %vm455, %v500, 0.0
        %v523 = vadd.f32 %v521, %v522
        %v524 = vsel %vm455, %v501, 0.0
        %v525 = vadd.f32 %v523, %v524
        %v526 = vsel %vm455, %v502, 0.0
        %v527 = vadd.f32 %v525, %v526
        %v528 = vsel %vm455, %v503, 0.0
        %v529 = vadd.f32 %v527, %v528
        %v530 = vsel %vm455, %v504, 0.0
        %v531 = vadd.f32 %v529, %v530
        %v532 = vsel %vm455, %v505, 0.0
        %v533 = vadd.f32 %v531, %v532
        %v534 = vsel %vm455, %v506, 0.0
        %v535 = vadd.f32 %v533, %v534
        %v536 = vsel %vm455, %v507, 0.0
        %v537 = vadd.f32 %v535, %v536
        %v538 = vsel %vm455, %v508, 0.0
        %v539 = vadd.f32 %v537, %v538
        %v540 = vrot.slane %v539, 4
        %v541 = vadd.f32 %v539, %v540
        %v542 = vrot.slane %v541, 2
        %v543 = vadd.f32 %v541, %v542
        %v544 = vrot.slane %v543, 1
        %v545 = vadd.f32 %v543, %v544
        %v546 = vsel %vm270, %v492, %v545
        %vm547 = vcmask 58368
        %548 = vst.msk [vmem:[%s199] sm:$0x3] %vm547, %v546
        %s549 = smul.u32 16, %s19
        %p550 = scmp.lt.s32.totalorder %s549, 31
        %s551 = scalar_select %p550, %s549, 31
        %s552 = smul.addr %s551, 4
        %s553 = scalar_lea.vmem %s3, %s552
        %s554 = sand.u32 %s121, 1
        %s555 = scalar_lea.sflag [#allocation3], %s554
        %s556 = sand.u32 %s121, 1
        %s557 = smul.addr %s556, 2
        %s558 = scalar_lea.vmem [#allocation2], %s557
        // Predicated region
        $region33: #{tpu_custom_call.1} parent=31 // pred_check
          %p559 = pneg %p105
        $region34: #{tpu_custom_call.1} parent=31 // pred_check_branch
          %561 = sbr.rel (%p559) target = $region36
        $region35: #{tpu_custom_call.1} parent=31 // pred_region
          %s562 = smul.u32 16, %s19
        $region36: #{tpu_custom_call.1} parent=31 // pred_fallthru
          _
        // Predicated region
        $region37: #{tpu_custom_call.1} parent=31 // pred_check
          %p563 = pneg %p131
        $region38: #{tpu_custom_call.1} parent=31 // pred_check_branch
          %565 = sbr.rel (%p563) target = $region40
        $region39: #{tpu_custom_call.1} parent=31 // pred_region
          %s567 = ssub.s32 32, 32
          %568 = vsyncadd %s555, %s567
          %s569 = smul.addr %s19, 32
          %s570 = scalar_lea.hbm %s4, %s569
          %s572 = sshll.u32 %s558, 4
          %s573 = int_to_ptr.vmem [resolvable:$true] %s572
          %575 = dma.vmem_to_hbm [thread:$0]  %s573, 32, %s570, %s555
        $region40: #{tpu_custom_call.1} parent=31 // pred_fallthru
          _
      $region32: #{tpu_custom_call.1} parent=5 // pred_fallthru
        _
      %p576 = scmp.le.s32.totalorder 2, %s14
      // Predicated region
      $region41: #{tpu_custom_call.1} parent=5 // pred_check
        %p577 = pneg %p576
      $region42: #{tpu_custom_call.1} parent=5 // pred_check_branch
        %579 = sbr.rel (%p577) target = $region44
      $region43: #{tpu_custom_call.1} parent=5 // pred_region
        %s580 = ssub.s32 %s14, 2
        // Predicated region
        $region45: #{tpu_custom_call.1} parent=43 // pred_check
          %p581 = pneg %p111
        $region46: #{tpu_custom_call.1} parent=43 // pred_check_branch
          %583 = sbr.rel (%p581) target = $region48
        $region47: #{tpu_custom_call.1} parent=43 // pred_region
          %s584 = smul.u32 16, %s20
          %p585 = scmp.lt.s32.totalorder %s584, 31
          %s586 = scalar_select %p585, %s584, 31
          %s587 = smul.addr %s586, 4
          %s588 = scalar_lea.vmem %s3, %s587
        $region48: #{tpu_custom_call.1} parent=43 // pred_fallthru
          _
        // Predicated region
        $region49: #{tpu_custom_call.1} parent=43 // pred_check
          %p589 = pneg %p137
        $region50: #{tpu_custom_call.1} parent=43 // pred_check_branch
          %591 = sbr.rel (%p589) target = $region52
        $region51: #{tpu_custom_call.1} parent=43 // pred_region
          %s592 = sand.u32 %s122, 1
          %s593 = scalar_lea.sflag [#allocation3], %s592
          %s594 = sand.u32 %s122, 1
          %s595 = smul.addr %s594, 2
          %s596 = scalar_lea.vmem [#allocation2], %s595
          %597 = dma.done %s593, 32
        $region52: #{tpu_custom_call.1} parent=43 // pred_fallthru
          _
      $region44: #{tpu_custom_call.1} parent=5 // pred_fallthru
        _
    $region6: #{tpu_custom_call.1} parent=1 // loop_footer
      %s18 = sadd.s32 1, %s14
    $region7: #{tpu_custom_call.1} parent=1 // loop_footer_branch
      %13 = sbr.rel target = $region3
    $region8: #{tpu_custom_call.1} parent=1 // loop_exit
      _
    %598 = vsyncpa [#allocation3], 1
    %s599 = scalar_lea.sflag [#allocation3], 1
    %600 = vsyncpa %s599, 1

</llo_original>
